<compile_context>
chip_gen: v6e
topology: v6e:2x2x1
jax: 0.10.0
libtpu: 0.0.40
codegen_flags: <defaults>
</compile_context>

<pallas_src>
import jax
import jax.numpy as jnp
from jax.experimental import pallas as pl
from jax.experimental.pallas import tpu as pltpu


def _round_up(x, m):
    return (x + m - 1) // m * m


def edge_encoder_kernel(len_ref, type_ref, w_ref, b_ref, emb_ref, out_ref):
    # len_ref : (TE, 2) f32   [edge_length_t, edge_length_T]
    # type_ref: (TE, 1) i32   edge_type
    # w_ref   : (2, H)  f32   distance-linear weight
    # b_ref   : (1, H)  f32   distance-linear bias
    # emb_ref : (BOND_PAD, H) f32  zero-padded bond embedding table (BOND_PAD = 128k)
    # out_ref : (TE, H)
    lengths = len_ref[...]                                     # (TE, 2)
    etype = type_ref[...]                                      # (TE, 1) int32

    # dist_emb on the VPU: two broadcast FMAs + bias + relu (a K=2 matmul wastes MXU setup;
    # on v5e/v6e this VPU work is hidden under the HBM write).
    dist = (lengths[:, 0:1] * w_ref[0:1, :]
            + lengths[:, 1:2] * w_ref[1:2, :]
            + b_ref[...])
    dist = jnp.maximum(dist, 0.0)                              # (TE, H) f32

    # bond_emb: lane-dense one-hot (TE, 128) @ zero-padded table (128, H) on the MXU.
    te = lengths.shape[0]
    bond_pad = emb_ref.shape[0]
    iota = jax.lax.broadcasted_iota(jnp.int32, (te, bond_pad), 1)   # (TE, BOND_PAD)
    onehot = (etype == iota).astype(jnp.float32)                    # lane-dense compare
    bond = jnp.dot(onehot, emb_ref[...], preferred_element_type=jnp.float32)

    out_ref[...] = (dist * bond).astype(out_ref.dtype)


def _derive_tile_e(E, H, out_bytes):
    # ~4 MiB per output buffer (x2 double-buffered) makes the ~0.35 us per-grid-step
    # overhead negligible vs. the tile's HBM write time while staying far inside VMEM.
    budget = 4 << 20
    tile = budget // (H * out_bytes)
    tile = min(tile, 4096)
    # Keep >= 2 grid steps so the single "parallel" axis can shard across both v7x TCs.
    tile = min(tile, _round_up(pl.cdiv(E, 2), 16))
    tile = max(16, (tile // 16) * 16)
    return int(tile)


def edge_encoder(edge_length_t, edge_length_T, edge_type, w, b, emb,
                 *, tile_e=None, out_dtype=jnp.float32):
    """edge_length_t/T: (E, 1) f32; edge_type: (E,) int -> (E, hidden_dim) out_dtype."""
    E = edge_length_t.shape[0]
    H = w.shape[1]
    bond_dim = emb.shape[0]
    bond_pad = _round_up(max(bond_dim, 1), 128)
    out_bytes = jnp.dtype(out_dtype).itemsize

    if tile_e is None:
        tile_e = _derive_tile_e(E, H, out_bytes)
    tile_e = max(16, min(int(tile_e), _round_up(E, 16)))
    tile_e = max(16, (tile_e // 16) * 16)                      # bf16-safe (16, 128) tiling

    # Per-edge inputs: lane-packed lengths + separate int32 type (no bitcast games).
    lengths = jnp.concatenate(
        [edge_length_t.astype(jnp.float32), edge_length_T.astype(jnp.float32)], axis=1)
    etype = edge_type.astype(jnp.int32).reshape(E, 1)
    emb_p = jnp.zeros((bond_pad, H), jnp.float32).at[:bond_dim].set(
        emb.astype(jnp.float32))

    grid = (pl.cdiv(E, tile_e),)                               # ragged last tile handled
                                                               # by Pallas (no pad/slice)

    cost = pl.CostEstimate(
        flops=int(E * H * (2 * bond_pad + 6)),
        transcendentals=0,
        bytes_accessed=int(E * (3 * 4 + H * out_bytes) + (bond_pad + 3) * H * 4),
    )
    vmem_need = 2 * (tile_e * H * out_bytes + tile_e * 12 + (bond_pad + 3) * H * 4)
    vmem_limit = int(min(32 << 20, max(vmem_need + (2 << 20), 8 << 20)))

    out = pl.pallas_call(
        edge_encoder_kernel,
        out_shape=jax.ShapeDtypeStruct((E, H), out_dtype),
        grid_spec=pltpu.PrefetchScalarGridSpec(
            num_scalar_prefetch=0,
            grid=grid,
            in_specs=[
                pl.BlockSpec((tile_e, 2), lambda i: (i, 0)),
                pl.BlockSpec((tile_e, 1), lambda i: (i, 0)),
                pl.BlockSpec((2, H), lambda i: (0, 0)),
                pl.BlockSpec((1, H), lambda i: (0, 0)),
                pl.BlockSpec((bond_pad, H), lambda i: (0, 0)),
            ],
            out_specs=pl.BlockSpec((tile_e, H), lambda i: (i, 0)),
        ),
        compiler_params=pltpu.CompilerParams(
            dimension_semantics=("parallel",),
            vmem_limit_bytes=vmem_limit,
        ),
        cost_estimate=cost,
    )(lengths, etype, w.astype(jnp.float32), b.astype(jnp.float32), emb_p)
    return out


def reference(edge_length_t, edge_length_T, edge_type, w, b, emb):
    lengths = jnp.concatenate([edge_length_t, edge_length_T], axis=1)
    dist = jnp.maximum(lengths @ w + b, 0.0)
    bond = emb[edge_type]
    return dist * bond


if __name__ == "__main__":
    # Small synthetic shapes consistent with the module's forward signature.
    E = 128            # number of edges
    HIDDEN = 128       # hidden_dim (lane-dense output)
    BOND = 10          # bond_dim (module default)

    key = jax.random.PRNGKey(0)
    k1, k2, k3, k4, k5, k6 = jax.random.split(key, 6)

    edge_length_t = jax.random.uniform(k1, (E, 1), jnp.float32, 0.5, 3.0)
    edge_length_T = jax.random.uniform(k2, (E, 1), jnp.float32, 0.5, 3.0)
    edge_type = jax.random.randint(k3, (E,), 0, BOND, jnp.int32)

    # Deterministic synthetic parameters (no checkpoint load).
    w = jax.random.normal(k4, (2, HIDDEN), jnp.float32) * 0.1
    b = jax.random.normal(k5, (1, HIDDEN), jnp.float32) * 0.1
    emb = jax.random.normal(k6, (BOND, HIDDEN), jnp.float32) * 0.1

    out = edge_encoder(edge_length_t, edge_length_T, edge_type, w, b, emb)
    out = jax.block_until_ready(out)
    ref = reference(edge_length_t, edge_length_T, edge_type, w, b, emb)
    assert out.shape == (E, HIDDEN)
    assert jnp.allclose(out, ref, atol=1e-5, rtol=1e-5), "mismatch vs reference"

    # Ragged edge count exercises the boundary-tile (masked-write) path.
    E2 = 100
    out2 = edge_encoder(edge_length_t[:E2], edge_length_T[:E2], edge_type[:E2], w, b, emb)
    out2 = jax.block_until_ready(out2)
    ref2 = reference(edge_length_t[:E2], edge_length_T[:E2], edge_type[:E2], w, b, emb)
    assert out2.shape == (E2, HIDDEN)
    assert jnp.allclose(out2, ref2, atol=1e-5, rtol=1e-5), "mismatch vs reference (ragged)"

    # bf16-output path (halves HBM write traffic); math stays f32 internally.
    out3 = edge_encoder(edge_length_t, edge_length_T, edge_type, w, b, emb,
                        out_dtype=jnp.bfloat16)
    out3 = jax.block_until_ready(out3)
    assert out3.dtype == jnp.bfloat16 and out3.shape == (E, HIDDEN)
    assert jnp.allclose(out3.astype(jnp.float32), ref, atol=1e-2, rtol=2e-2), \
        "mismatch vs reference (bf16)"

    print("KERNEL_OK")
</pallas_src>

<mosaic_0001>
module attributes {stable_mosaic.version = 11 : i64} {
  func.func @edge_encoder_kernel(%arg0: i32, %arg1: memref<64x2xf32, #tpu.memory_space<vmem>>, %arg2: memref<64x1xi32, #tpu.memory_space<vmem>>, %arg3: memref<2x128xf32, #tpu.memory_space<vmem>>, %arg4: memref<1x128xf32, #tpu.memory_space<vmem>>, %arg5: memref<128x128xf32, #tpu.memory_space<vmem>>, %arg6: memref<64x128xf32, #tpu.memory_space<vmem>>) attributes {dimension_semantics = [#tpu.dimension_semantics<parallel>], iteration_bounds = array<i64: 2>, scalar_prefetch = 0 : i64, scratch_operands = 0 : i64, tpu.core_type = #tpu.core_type<tc>, window_params = [{transform_indices = @transform_0, window_bounds = array<i64: 64, 2>}, {transform_indices = @transform_1, window_bounds = array<i64: 64, 1>}, {pipeline_mode = #tpu.pipeline_mode<synchronous>, transform_indices = @transform_2, window_bounds = array<i64: 2, 128>}, {pipeline_mode = #tpu.pipeline_mode<synchronous>, transform_indices = @transform_3, window_bounds = array<i64: 1, 128>}, {pipeline_mode = #tpu.pipeline_mode<synchronous>, transform_indices = @transform_4, window_bounds = array<i64: 128, 128>}, {transform_indices = @transform_5, window_bounds = array<i64: 64, 128>}]} {
    %c0 = arith.constant 0 : index
    %c0_0 = arith.constant 0 : index
    %0 = vector.load %arg1[%c0, %c0_0] : memref<64x2xf32, #tpu.memory_space<vmem>>, vector<64x2xf32>
    %c0_1 = arith.constant 0 : index
    %c0_2 = arith.constant 0 : index
    %1 = vector.load %arg2[%c0_1, %c0_2] : memref<64x1xi32, #tpu.memory_space<vmem>>, vector<64x1xi32>
    %2 = vector.extract_strided_slice %0 {offsets = [0, 0], sizes = [64, 1], strides = [1, 1]} : vector<64x2xf32> to vector<64x1xf32>
    %c0_3 = arith.constant 0 : index
    %c0_4 = arith.constant 0 : index
    %3 = vector.load %arg3[%c0_3, %c0_4] : memref<2x128xf32, #tpu.memory_space<vmem>>, vector<1x128xf32>
    %4 = vector.broadcast %2 : vector<64x1xf32> to vector<64x128xf32>
    %5 = vector.broadcast %3 : vector<1x128xf32> to vector<64x128xf32>
    %6 = arith.mulf %4, %5 : vector<64x128xf32>
    %7 = vector.extract_strided_slice %0 {offsets = [0, 1], sizes = [64, 1], strides = [1, 1]} : vector<64x2xf32> to vector<64x1xf32>
    %c1 = arith.constant 1 : index
    %c0_5 = arith.constant 0 : index
    %8 = vector.load %arg3[%c1, %c0_5] : memref<2x128xf32, #tpu.memory_space<vmem>>, vector<1x128xf32>
    %9 = vector.broadcast %7 : vector<64x1xf32> to vector<64x128xf32>
    %10 = vector.broadcast %8 : vector<1x128xf32> to vector<64x128xf32>
    %11 = arith.mulf %9, %10 : vector<64x128xf32>
    %12 = arith.addf %6, %11 : vector<64x128xf32>
    %c0_6 = arith.constant 0 : index
    %c0_7 = arith.constant 0 : index
    %13 = vector.load %arg4[%c0_6, %c0_7] : memref<1x128xf32, #tpu.memory_space<vmem>>, vector<1x128xf32>
    %14 = vector.broadcast %13 : vector<1x128xf32> to vector<64x128xf32>
    %15 = arith.addf %12, %14 : vector<64x128xf32>
    %cst = arith.constant 0.000000e+00 : f32
    %16 = vector.broadcast %cst : f32 to vector<64x128xf32>
    %17 = arith.maximumf %15, %16 : vector<64x128xf32>
    %18 = tpu.iota {dimensions = array<i32: 1>} : vector<64x128xi32>
    %19 = vector.broadcast %1 : vector<64x1xi32> to vector<64x128xi32>
    %20 = arith.cmpi eq, %19, %18 : vector<64x128xi32>
    %21 = arith.extui %20 : vector<64x128xi1> to vector<64x128xi32>
    %22 = arith.sitofp %21 : vector<64x128xi32> to vector<64x128xf32>
    %c0_8 = arith.constant 0 : index
    %c0_9 = arith.constant 0 : index
    %23 = vector.load %arg5[%c0_8, %c0_9] : memref<128x128xf32, #tpu.memory_space<vmem>>, vector<128x128xf32>
    %cst_10 = arith.constant dense<0.000000e+00> : vector<64x128xf32>
    %24 = tpu.matmul %22, %23, %cst_10 {dimension_numbers = #tpu.dot_dimension_numbers<[1], [0], [0], [1], [0, 0, 1, 1], [], []>} : vector<64x128xf32>, vector<128x128xf32>, vector<64x128xf32> -> vector<64x128xf32>
    %25 = arith.mulf %17, %24 : vector<64x128xf32>
    %c0_11 = arith.constant 0 : index
    %c0_12 = arith.constant 0 : index
    %26 = vector.load %arg6[%c0_11, %c0_12] : memref<64x128xf32, #tpu.memory_space<vmem>>, vector<64x128xf32>
    tpu.vector_store %arg6[%c0_11, %c0_12], %25 {strides = array<i32>} : memref<64x128xf32, #tpu.memory_space<vmem>>, vector<64x128xf32>,
    return
  }
  func.func @transform_0(%arg0: i32) -> (i32, i32) {
    %c0_i32 = arith.constant 0 : i32
    %c0_i32_0 = arith.constant 0 : i32
    return %arg0, %c0_i32 : i32, i32
  }
  func.func @transform_1(%arg0: i32) -> (i32, i32) {
    %c0_i32 = arith.constant 0 : i32
    %c0_i32_0 = arith.constant 0 : i32
    return %arg0, %c0_i32 : i32, i32
  }
  func.func @transform_2(%arg0: i32) -> (i32, i32) {
    %c0_i32 = arith.constant 0 : i32
    %c0_i32_0 = arith.constant 0 : i32
    %c0_i32_1 = arith.constant 0 : i32
    return %c0_i32, %c0_i32_0 : i32, i32
  }
  func.func @transform_3(%arg0: i32) -> (i32, i32) {
    %c0_i32 = arith.constant 0 : i32
    %c0_i32_0 = arith.constant 0 : i32
    %c0_i32_1 = arith.constant 0 : i32
    return %c0_i32, %c0_i32_0 : i32, i32
  }
  func.func @transform_4(%arg0: i32) -> (i32, i32) {
    %c0_i32 = arith.constant 0 : i32
    %c0_i32_0 = arith.constant 0 : i32
    %c0_i32_1 = arith.constant 0 : i32
    return %c0_i32, %c0_i32_0 : i32, i32
  }
  func.func @transform_5(%arg0: i32) -> (i32, i32) {
    %c0_i32 = arith.constant 0 : i32
    %c0_i32_0 = arith.constant 0 : i32
    return %arg0, %c0_i32 : i32, i32
  }
}

</mosaic_0001>

<llo_original>
// kernel: tpu_custom_call.1
$region0: #{tpu_custom_call.1}
  #allocation0 [shape = 'u32[]', space=smem, size = 0x4, offset = 0x4, fixed_abs, tag = 'smem constant byte address 0x4 - core index']
  #allocation1 [shape = 'u32[144,128]{1,0:T(1,128)}', space=vmem, size = 0x12000, scoped, tag = 'internal scratch']
  %s0 = inlined_call_operand.vmem [shape: f32[128,2], index: 0, kind: input, shape index: {}]
  %s1 = inlined_call_operand.vmem [shape: s32[128,1], index: 1, kind: input, shape index: {}]
  %s2 = inlined_call_operand.vmem [shape: f32[2,128], index: 2, kind: input, shape index: {}]
  %s3 = inlined_call_operand.vmem [shape: f32[1,128], index: 3, kind: input, shape index: {}]
  %s4 = inlined_call_operand.vmem [shape: f32[128,128], index: 4, kind: input, shape index: {}]
  %s5 = inlined_call_operand.hbm [shape: f32[128,128], index: 5, kind: output, shape index: {}]
  %s6 = sld [smem:[#allocation0]]
  $region53: #{tpu_custom_call.1} parent=0
    _
  %s8 = ssub.s32 1, %s6
  %s9 = scalar_select 0, %s8, %s6
  $region1: #{tpu_custom_call.1} parent=0
    #allocation2 [shape = 'u8[65536]{0}', space=vmem, size = 0x10000, scoped, tag = 'output window, operand 0']
    #allocation3 [shape = 's32[2]{0}', space=sflag, size = 0x8, scoped, tag = 'scoped memory for tpu_custom_call.1']
    %10 = vsyncpa [#allocation3], 0
    %s11 = scalar_lea.sflag [#allocation3], 1
    %12 = vsyncpa %s11, 0
    loop: start=0, step=1, limit=4
    $region2: #{tpu_custom_call.1} parent=1 // loop_pre_header
      _
    $region3: #{tpu_custom_call.1} parent=1 // loop_header
      %s14 = sphi 0, %s18
      %p15 = scmp.ge.s32.totalorder %s14, 4
      %s24 = sphi 0, %s26
      %s27 = sphi 0, %s24
      %s28 = sphi 0, %s27
      %s44 = sphi 0, %s28
      %s50 = sphi 0, %s52
      %s53 = sphi 0, %s50
      %s54 = sphi 0, %s53
      %s70 = sphi 0, %s54
      %s74 = sphi 0, %s74
      %s76 = sphi 0, %s74
      %s77 = sphi 0, %s76
      %s91 = sphi 0, %s77
      %s95 = sphi 0, %s95
      %s97 = sphi 0, %s95
      %s98 = sphi 0, %s97
      %s112 = sphi 0, %s98
      %s116 = sphi 0, %s116
      %s118 = sphi 0, %s116
      %s119 = sphi 0, %s118
      %s133 = sphi 0, %s119
      %s139 = sphi 0, %s141
      %s142 = sphi 0, %s139
      %s143 = sphi 0, %s142
      %s159 = sphi 0, %s143
    $region4: #{tpu_custom_call.1} parent=1 // loop_header_branch
      %17 = sbr.rel (%p15) target = $region8
    $region5: #{tpu_custom_call.1} parent=1 // loop_body
      %s19 = ssub.s32 %s14, 1
      %s20 = ssub.s32 %s14, 2
      %s21 = sadd.s32 %s14, 1
      %s22 = ssub.s32 %s14, %s21
      %p23 = scmp.eq.s32.totalorder %s22, 0
      %s25 = sadd.s32 %s24, 1
      %s26 = scalar_select %p23, %s24, %s25
      %p29 = pneg %p23
      %p30 = scmp.eq.s32.totalorder %s14, 1
      %p31 = por %p29, %p30
      %p32 = scmp.ne.s32.totalorder %s24, %s27
      %p33 = scmp.eq.s32.totalorder %s14, 0
      %p34 = por %p32, %p33
      %p35 = scmp.ne.s32.totalorder %s24, %s27
      %p36 = scmp.eq.s32.totalorder %s19, 1
      %p37 = por %p35, %p36
      %p38 = scmp.ne.s32.totalorder %s27, %s28
      %p39 = scmp.eq.s32.totalorder %s19, 0
      %p40 = por %p38, %p39
      %p41 = scmp.ne.s32.totalorder %s27, %s28
      %p42 = scmp.eq.s32.totalorder %s20, 1
      %p43 = por %p41, %p42
      %p45 = scmp.ne.s32.totalorder %s28, %s44
      %p46 = scmp.eq.s32.totalorder %s20, 0
      %p47 = por %p45, %p46
      %s48 = ssub.s32 %s14, %s21
      %p49 = scmp.eq.s32.totalorder %s48, 0
      %s51 = sadd.s32 %s50, 1
      %s52 = scalar_select %p49, %s50, %s51
      %p55 = pneg %p49
      %p56 = scmp.eq.s32.totalorder %s14, 1
      %p57 = por %p55, %p56
      %p58 = scmp.ne.s32.totalorder %s50, %s53
      %p59 = scmp.eq.s32.totalorder %s14, 0
      %p60 = por %p58, %p59
      %p61 = scmp.ne.s32.totalorder %s50, %s53
      %p62 = scmp.eq.s32.totalorder %s19, 1
      %p63 = por %p61, %p62
      %p64 = scmp.ne.s32.totalorder %s53, %s54
      %p65 = scmp.eq.s32.totalorder %s19, 0
      %p66 = por %p64, %p65
      %p67 = scmp.ne.s32.totalorder %s53, %s54
      %p68 = scmp.eq.s32.totalorder %s20, 1
      %p69 = por %p67, %p68
      %p71 = scmp.ne.s32.totalorder %s54, %s70
      %p72 = scmp.eq.s32.totalorder %s20, 0
      %p73 = por %p71, %p72
      %s75 = sadd.s32 %s74, 1
      %p78 = scmp.eq.s32.totalorder %s14, 1
      %p79 = scmp.ne.s32.totalorder %s74, %s76
      %p80 = scmp.eq.s32.totalorder %s14, 0
      %p81 = por %p79, %p80
      %p82 = scmp.ne.s32.totalorder %s74, %s76
      %p83 = scmp.eq.s32.totalorder %s19, 1
      %p84 = por %p82, %p83
      %p85 = scmp.ne.s32.totalorder %s76, %s77
      %p86 = scmp.eq.s32.totalorder %s19, 0
      %p87 = por %p85, %p86
      %p88 = scmp.ne.s32.totalorder %s76, %s77
      %p89 = scmp.eq.s32.totalorder %s20, 1
      %p90 = por %p88, %p89
      %p92 = scmp.ne.s32.totalorder %s77, %s91
      %p93 = scmp.eq.s32.totalorder %s20, 0
      %p94 = por %p92, %p93
      %s96 = sadd.s32 %s95, 1
      %p99 = scmp.eq.s32.totalorder %s14, 1
      %p100 = scmp.ne.s32.totalorder %s95, %s97
      %p101 = scmp.eq.s32.totalorder %s14, 0
      %p102 = por %p100, %p101
      %p103 = scmp.ne.s32.totalorder %s95, %s97
      %p104 = scmp.eq.s32.totalorder %s19, 1
      %p105 = por %p103, %p104
      %p106 = scmp.ne.s32.totalorder %s97, %s98
      %p107 = scmp.eq.s32.totalorder %s19, 0
      %p108 = por %p106, %p107
      %p109 = scmp.ne.s32.totalorder %s97, %s98
      %p110 = scmp.eq.s32.totalorder %s20, 1
      %p111 = por %p109, %p110
      %p113 = scmp.ne.s32.totalorder %s98, %s112
      %p114 = scmp.eq.s32.totalorder %s20, 0
      %p115 = por %p113, %p114
      %s117 = sadd.s32 %s116, 1
      %p120 = scmp.eq.s32.totalorder %s14, 1
      %p121 = scmp.ne.s32.totalorder %s116, %s118
      %p122 = scmp.eq.s32.totalorder %s14, 0
      %p123 = por %p121, %p122
      %p124 = scmp.ne.s32.totalorder %s116, %s118
      %p125 = scmp.eq.s32.totalorder %s19, 1
      %p126 = por %p124, %p125
      %p127 = scmp.ne.s32.totalorder %s118, %s119
      %p128 = scmp.eq.s32.totalorder %s19, 0
      %p129 = por %p127, %p128
      %p130 = scmp.ne.s32.totalorder %s118, %s119
      %p131 = scmp.eq.s32.totalorder %s20, 1
      %p132 = por %p130, %p131
      %p134 = scmp.ne.s32.totalorder %s119, %s133
      %p135 = scmp.eq.s32.totalorder %s20, 0
      %p136 = por %p134, %p135
      %s137 = ssub.s32 %s14, %s21
      %p138 = scmp.eq.s32.totalorder %s137, 0
      %s140 = sadd.s32 %s139, 1
      %s141 = scalar_select %p138, %s139, %s140
      %p144 = pneg %p138
      %p145 = scmp.eq.s32.totalorder %s14, 1
      %p146 = por %p144, %p145
      %p147 = scmp.ne.s32.totalorder %s139, %s142
      %p148 = scmp.eq.s32.totalorder %s14, 0
      %p149 = por %p147, %p148
      %p150 = scmp.ne.s32.totalorder %s139, %s142
      %p151 = scmp.eq.s32.totalorder %s19, 1
      %p152 = por %p150, %p151
      %p153 = scmp.ne.s32.totalorder %s142, %s143
      %p154 = scmp.eq.s32.totalorder %s19, 0
      %p155 = por %p153, %p154
      %p156 = scmp.ne.s32.totalorder %s142, %s143
      %p157 = scmp.eq.s32.totalorder %s20, 1
      %p158 = por %p156, %p157
      %p160 = scmp.ne.s32.totalorder %s143, %s159
      %p161 = scmp.eq.s32.totalorder %s20, 0
      %p162 = por %p160, %p161
      %p163 = scmp.le.s32.totalorder 1, %s14
      %p164 = scmp.lt.s32.totalorder %s14, 3
      %p165 = pnand %p163, %p164
      %p166 = pneg %p165
      // Predicated region
      $region9: #{tpu_custom_call.1} parent=5 // pred_check
        _
      $region10: #{tpu_custom_call.1} parent=5 // pred_check_branch
        %168 = sbr.rel (%p165) target = $region12
      $region11: #{tpu_custom_call.1} parent=5 // pred_region
        %s169 = ssub.s32 %s14, 1
        // Predicated region
        $region13: #{tpu_custom_call.1} parent=11 // pred_check
          %p170 = pneg %p87
        $region14: #{tpu_custom_call.1} parent=11 // pred_check_branch
          %172 = sbr.rel (%p170) target = $region16
        $region15: #{tpu_custom_call.1} parent=11 // pred_region
          _
        $region16: #{tpu_custom_call.1} parent=11 // pred_fallthru
          _
        // Predicated region
        $region17: #{tpu_custom_call.1} parent=11 // pred_check
          %p173 = pneg %p108
        $region18: #{tpu_custom_call.1} parent=11 // pred_check_branch
          %175 = sbr.rel (%p173) target = $region20
        $region19: #{tpu_custom_call.1} parent=11 // pred_region
          _
        $region20: #{tpu_custom_call.1} parent=11 // pred_fallthru
          _
        // Predicated region
        $region21: #{tpu_custom_call.1} parent=11 // pred_check
          %p176 = pneg %p129
        $region22: #{tpu_custom_call.1} parent=11 // pred_check_branch
          %178 = sbr.rel (%p176) target = $region24
        $region23: #{tpu_custom_call.1} parent=11 // pred_region
          _
        $region24: #{tpu_custom_call.1} parent=11 // pred_fallthru
          _
      $region12: #{tpu_custom_call.1} parent=5 // pred_fallthru
        _
      %p179 = scmp.lt.s32.totalorder %s14, 2
      // Predicated region
      $region25: #{tpu_custom_call.1} parent=5 // pred_check
        %p180 = pneg %p179
      $region26: #{tpu_custom_call.1} parent=5 // pred_check_branch
        %182 = sbr.rel (%p180) target = $region28
      $region27: #{tpu_custom_call.1} parent=5 // pred_region
        // Predicated region
        $region29: #{tpu_custom_call.1} parent=27 // pred_check
          %p183 = pneg %p34
        $region30: #{tpu_custom_call.1} parent=27 // pred_check_branch
          %185 = sbr.rel (%p183) target = $region32
        $region31: #{tpu_custom_call.1} parent=27 // pred_region
          %s186 = smul.u32 8, %s14
          %p187 = scmp.lt.s32.totalorder %s186, 15
          %s188 = scalar_select %p187, %s186, 15
          %s189 = smul.addr %s188, 8
          %s190 = scalar_lea.vmem %s0, %s189
          %s191 = smul.u32 8, %s14
        $region32: #{tpu_custom_call.1} parent=27 // pred_fallthru
          _
        // Predicated region
        $region33: #{tpu_custom_call.1} parent=27 // pred_check
          %p192 = pneg %p60
        $region34: #{tpu_custom_call.1} parent=27 // pred_check_branch
          %194 = sbr.rel (%p192) target = $region36
        $region35: #{tpu_custom_call.1} parent=27 // pred_region
          %s195 = smul.u32 8, %s14
          %p196 = scmp.lt.s32.totalorder %s195, 15
          %s197 = scalar_select %p196, %s195, 15
          %s198 = smul.addr %s197, 8
          %s199 = scalar_lea.vmem %s1, %s198
          %s200 = smul.u32 8, %s14
        $region36: #{tpu_custom_call.1} parent=27 // pred_fallthru
          _
      $region28: #{tpu_custom_call.1} parent=5 // pred_fallthru
        _
      %p201 = scmp.le.s32.totalorder 1, %s14
      %p202 = scmp.lt.s32.totalorder %s14, 3
      %p203 = pnand %p201, %p202
      %p204 = pneg %p203
      // Predicated region
      $region37: #{tpu_custom_call.1} parent=5 // pred_check
        _
      $region38: #{tpu_custom_call.1} parent=5 // pred_check_branch
        %206 = sbr.rel (%p203) target = $region40
      $region39: #{tpu_custom_call.1} parent=5 // pred_region
        %s207 = ssub.s32 %s14, 1
        %s208 = smul.u32 8, %s19
        %p209 = scmp.lt.s32.totalorder %s208, 15
        %s210 = scalar_select %p209, %s208, 15
        %s211 = smul.addr %s210, 8
        %s212 = scalar_lea.vmem %s0, %s211
        %p213 = pneg %p40
        %p214 = pneg %p37
        %s215 = smul.u32 8, %s19
        %p216 = scmp.lt.s32.totalorder %s215, 15
        %s217 = scalar_select %p216, %s215, 15
        %s218 = smul.addr %s217, 8
        %s219 = scalar_lea.vmem %s1, %s218
        %p220 = pneg %p66
        %p221 = pneg %p63
        %p222 = pneg %p87
        %p223 = pneg %p84
        %p224 = pneg %p108
        %p225 = pneg %p105
        %p226 = pneg %p129
        %p227 = pneg %p126
        %p228 = pneg %p155
        %p229 = pneg %p152
        %s230 = sand.u32 %s142, 1
        %s231 = scalar_lea.sflag [#allocation3], %s230
        %s232 = sand.u32 %s142, 1
        %s233 = smul.addr %s232, 64
        %s234 = scalar_lea.vmem [#allocation2], %s233
        %s235 = smul.u32 8, %s19
        %p236 = scmp.lt.s32.totalorder %s235, 15
        %s237 = scalar_select %p236, %s235, 15
        %s238 = smul.addr %s237, 8
        %s239 = scalar_lea.vmem %s0, %s238
        %s240 = smul.u32 8, %s19
        %s241 = smul.u32 8, %s19
        %p242 = scmp.lt.s32.totalorder %s241, 15
        %s243 = scalar_select %p242, %s241, 15
        %s244 = smul.addr %s243, 8
        %s245 = scalar_lea.vmem %s1, %s244
        %s246 = smul.u32 8, %s19
        %s247 = smul.u32 8, %s19
        %v248 = vld [vmem:[%s239] sm:$0xff]
        %v249 = vld [vmem:[%s239 + $0x8] sm:$0xff]
        %v250 = vld [vmem:[%s239 + $0x10] sm:$0xff]
        %v251 = vld [vmem:[%s239 + $0x18] sm:$0xff]
        %v252 = vld [vmem:[%s239 + $0x20] sm:$0xff]
        %v253 = vld [vmem:[%s239 + $0x28] sm:$0xff]
        %v254 = vld [vmem:[%s239 + $0x30] sm:$0xff]
        %v255 = vld [vmem:[%s239 + $0x38] sm:$0xff]
        %v256 = vld [vmem:[%s245] sm:$0xff]
        %v257 = vld [vmem:[%s245 + $0x8] sm:$0xff]
        %v258 = vld [vmem:[%s245 + $0x10] sm:$0xff]
        %v259 = vld [vmem:[%s245 + $0x18] sm:$0xff]
        %v260 = vld [vmem:[%s245 + $0x20] sm:$0xff]
        %v261 = vld [vmem:[%s245 + $0x28] sm:$0xff]
        %v262 = vld [vmem:[%s245 + $0x30] sm:$0xff]
        %v263 = vld [vmem:[%s245 + $0x38] sm:$0xff]
        %v264 = vld [vmem:[%s2] sm:$0x1]
        %266 = vset.pattern.permute.xlu0 0
        %267 = vperm.xlu0 %266, %v248
        %v268 = vpop.permute.xlu0 %267
        %271 = vset.pattern.permute.xlu0 0
        %272 = vperm.xlu0 %271, %v249
        %v273 = vpop.permute.xlu0 %272
        %276 = vset.pattern.permute.xlu0 0
        %277 = vperm.xlu0 %276, %v250
        %v278 = vpop.permute.xlu0 %277
        %281 = vset.pattern.permute.xlu0 0
        %282 = vperm.xlu0 %281, %v251
        %v283 = vpop.permute.xlu0 %282
        %286 = vset.pattern.permute.xlu0 0
        %287 = vperm.xlu0 %286, %v252
        %v288 = vpop.permute.xlu0 %287
        %291 = vset.pattern.permute.xlu0 0
        %292 = vperm.xlu0 %291, %v253
        %v293 = vpop.permute.xlu0 %292
        %296 = vset.pattern.permute.xlu0 0
        %297 = vperm.xlu0 %296, %v254
        %v298 = vpop.permute.xlu0 %297
        %301 = vset.pattern.permute.xlu0 0
        %302 = vperm.xlu0 %301, %v255
        %v303 = vpop.permute.xlu0 %302
        %v305 = vlaneseq
        %v306 = vshrl.u32 %v305, 7
        %v307 = vsub.s32 0, %v306
        %v308 = vrot.slane %v264, %v307
        %v309 = vmul.f32 %v268, %v308
        %v310 = vmul.f32 %v273, %v308
        %v311 = vmul.f32 %v278, %v308
        %v312 = vmul.f32 %v283, %v308
        %v313 = vmul.f32 %v288, %v308
        %v314 = vmul.f32 %v293, %v308
        %v315 = vmul.f32 %v298, %v308
        %v316 = vmul.f32 %v303, %v308
        %v317 = vld [vmem:[%s2 + $0x1] sm:$0x1]
        %318 = vset.pattern.permute.xlu0 1
        %319 = vperm.xlu0 %318, %v248
        %v320 = vpop.permute.xlu0 %319
        %322 = vset.pattern.permute.xlu0 1
        %323 = vperm.xlu0 %322, %v249
        %v324 = vpop.permute.xlu0 %323
        %326 = vset.pattern.permute.xlu0 1
        %327 = vperm.xlu0 %326, %v250
        %v328 = vpop.permute.xlu0 %327
        %330 = vset.pattern.permute.xlu0 1
        %331 = vperm.xlu0 %330, %v251
        %v332 = vpop.permute.xlu0 %331
        %334 = vset.pattern.permute.xlu0 1
        %335 = vperm.xlu0 %334, %v252
        %v336 = vpop.permute.xlu0 %335
        %338 = vset.pattern.permute.xlu0 1
        %339 = vperm.xlu0 %338, %v253
        %v340 = vpop.permute.xlu0 %339
        %342 = vset.pattern.permute.xlu0 1
        %343 = vperm.xlu0 %342, %v254
        %v344 = vpop.permute.xlu0 %343
        %346 = vset.pattern.permute.xlu0 1
        %347 = vperm.xlu0 %346, %v255
        %v348 = vpop.permute.xlu0 %347
        %v350 = vlaneseq
        %v351 = vshrl.u32 %v350, 7
        %v352 = vsub.s32 0, %v351
        %v353 = vrot.slane %v317, %v352
        %v354 = vmul.f32 %v320, %v353
        %v355 = vmul.f32 %v324, %v353
        %v356 = vmul.f32 %v328, %v353
        %v357 = vmul.f32 %v332, %v353
        %v358 = vmul.f32 %v336, %v353
        %v359 = vmul.f32 %v340, %v353
        %v360 = vmul.f32 %v344, %v353
        %v361 = vmul.f32 %v348, %v353
        %v362 = vadd.f32 %v309, %v354
        %v363 = vadd.f32 %v310, %v355
        %v364 = vadd.f32 %v311, %v356
        %v365 = vadd.f32 %v312, %v357
        %v366 = vadd.f32 %v313, %v358
        %v367 = vadd.f32 %v314, %v359
        %v368 = vadd.f32 %v315, %v360
        %v369 = vadd.f32 %v316, %v361
        %v370 = vld [vmem:[%s3] sm:$0x1]
        %v372 = vlaneseq
        %v373 = vshrl.u32 %v372, 7
        %v374 = vsub.s32 0, %v373
        %v375 = vrot.slane %v370, %v374
        %v377 = vadd.f32 %v362, %v375
        %v378 = vadd.f32 %v363, %v375
        %v379 = vadd.f32 %v364, %v375
        %v380 = vadd.f32 %v365, %v375
        %v381 = vadd.f32 %v366, %v375
        %v382 = vadd.f32 %v367, %v375
        %v383 = vadd.f32 %v368, %v375
        %v384 = vadd.f32 %v369, %v375
        %v385 = vmax.f32 %v377, 0.0
        %v386 = vmax.f32 %v378, 0.0
        %v387 = vmax.f32 %v379, 0.0
        %v388 = vmax.f32 %v380, 0.0
        %v389 = vmax.f32 %v381, 0.0
        %v390 = vmax.f32 %v382, 0.0
        %v391 = vmax.f32 %v383, 0.0
        %v392 = vmax.f32 %v384, 0.0
        %v393 = vlaneseq
        %v394 = vand.u32 %v393, 127
        %395 = vset.pattern.permute.xlu0 0
        %396 = vperm.xlu0 %395, %v256
        %v397 = vpop.permute.xlu0 %396
        %398 = vset.pattern.permute.xlu0 0
        %399 = vperm.xlu0 %398, %v257
        %v400 = vpop.permute.xlu0 %399
        %401 = vset.pattern.permute.xlu0 0
        %402 = vperm.xlu0 %401, %v258
        %v403 = vpop.permute.xlu0 %402
        %404 = vset.pattern.permute.xlu0 0
        %405 = vperm.xlu0 %404, %v259
        %v406 = vpop.permute.xlu0 %405
        %407 = vset.pattern.permute.xlu0 0
        %408 = vperm.xlu0 %407, %v260
        %v409 = vpop.permute.xlu0 %408
        %410 = vset.pattern.permute.xlu0 0
        %411 = vperm.xlu0 %410, %v261
        %v412 = vpop.permute.xlu0 %411
        %413 = vset.pattern.permute.xlu0 0
        %414 = vperm.xlu0 %413, %v262
        %v415 = vpop.permute.xlu0 %414
        %416 = vset.pattern.permute.xlu0 0
        %417 = vperm.xlu0 %416, %v263
        %v418 = vpop.permute.xlu0 %417
        %vm419 = vcmp.eq.s32.totalorder %v397, %v394
        %vm420 = vcmp.eq.s32.totalorder %v400, %v394
        %vm421 = vcmp.eq.s32.totalorder %v403, %v394
        %vm422 = vcmp.eq.s32.totalorder %v406, %v394
        %vm423 = vcmp.eq.s32.totalorder %v409, %v394
        %vm424 = vcmp.eq.s32.totalorder %v412, %v394
        %vm425 = vcmp.eq.s32.totalorder %v415, %v394
        %vm426 = vcmp.eq.s32.totalorder %v418, %v394
        %v427 = vsel %vm419, 1, 0
        %v428 = vsel %vm420, 1, 0
        %v429 = vsel %vm421, 1, 0
        %v430 = vsel %vm422, 1, 0
        %v431 = vsel %vm423, 1, 0
        %v432 = vsel %vm424, 1, 0
        %v433 = vsel %vm425, 1, 0
        %v434 = vsel %vm426, 1, 0
        %v435 = vcvt.s32.f32 %v427
        %v436 = vcvt.s32.f32 %v428
        %v437 = vcvt.s32.f32 %v429
        %v438 = vcvt.s32.f32 %v430
        %v439 = vcvt.s32.f32 %v431
        %v440 = vcvt.s32.f32 %v432
        %v441 = vcvt.s32.f32 %v433
        %v442 = vcvt.s32.f32 %v434
        %v443 = vld [vmem:[%s4] sm:$0xff]
        %v444 = vld [vmem:[%s4 + $0x8] sm:$0xff]
        %v445 = vld [vmem:[%s4 + $0x10] sm:$0xff]
        %v446 = vld [vmem:[%s4 + $0x18] sm:$0xff]
        %v447 = vld [vmem:[%s4 + $0x20] sm:$0xff]
        %v448 = vld [vmem:[%s4 + $0x28] sm:$0xff]
        %v449 = vld [vmem:[%s4 + $0x30] sm:$0xff]
        %v450 = vld [vmem:[%s4 + $0x38] sm:$0xff]
        %v451 = vld [vmem:[%s4 + $0x40] sm:$0xff]
        %v452 = vld [vmem:[%s4 + $0x48] sm:$0xff]
        %v453 = vld [vmem:[%s4 + $0x50] sm:$0xff]
        %v454 = vld [vmem:[%s4 + $0x58] sm:$0xff]
        %v455 = vld [vmem:[%s4 + $0x60] sm:$0xff]
        %v456 = vld [vmem:[%s4 + $0x68] sm:$0xff]
        %v457 = vld [vmem:[%s4 + $0x70] sm:$0xff]
        %v458 = vld [vmem:[%s4 + $0x78] sm:$0xff]
        %459 = vmatprep.subr.mxu0 0.0
        %460 = vmatpush1.msra.mxu0 %v458
        %461 = vmatprep.subr.mxu0 0.0
        %462 = vmatpush1.msra.mxu0 %v457
        %463 = vmatprep.subr.mxu0 0.0
        %464 = vmatpush1.msra.mxu0 %v456
        %465 = vmatprep.subr.mxu0 0.0
        %466 = vmatpush1.msra.mxu0 %v455
        %467 = vmatprep.subr.mxu0 0.0
        %468 = vmatpush1.msra.mxu0 %v454
        %469 = vmatprep.subr.mxu0 0.0
        %470 = vmatpush1.msra.mxu0 %v453
        %471 = vmatprep.subr.mxu0 0.0
        %472 = vmatpush1.msra.mxu0 %v452
        %473 = vmatprep.subr.mxu0 0.0
        %474 = vmatpush1.msra.mxu0 %v451
        %475 = vmatprep.subr.mxu0 0.0
        %476 = vmatpush1.msra.mxu0 %v450
        %477 = vmatprep.subr.mxu0 0.0
        %478 = vmatpush1.msra.mxu0 %v449
        %479 = vmatprep.subr.mxu0 0.0
        %480 = vmatpush1.msra.mxu0 %v448
        %481 = vmatprep.subr.mxu0 0.0
        %482 = vmatpush1.msra.mxu0 %v447
        %483 = vmatprep.subr.mxu0 0.0
        %484 = vmatpush1.msra.mxu0 %v446
        %485 = vmatprep.subr.mxu0 0.0
        %486 = vmatpush1.msra.mxu0 %v445
        %487 = vmatprep.subr.mxu0 0.0
        %488 = vmatpush1.msra.mxu0 %v444
        %489 = vmatprep.subr.mxu0 0.0
        %490 = vmatpush1.msra.mxu0 %v443
        %491 = vmatprep.subr.mxu0 0.0
        %492 = vmatpush2.msra.mxu0 0.0
        %493 = vmatprep.subr.mxu0 0.0
        %494 = vmatpush2.msra.mxu0 0.0
        %495 = vmatprep.subr.mxu0 0.0
        %496 = vmatpush2.msra.mxu0 0.0
        %497 = vmatprep.subr.mxu0 0.0
        %498 = vmatpush2.msra.mxu0 0.0
        %499 = vmatprep.subr.mxu0 0.0
        %500 = vmatpush2.msra.mxu0 0.0
        %501 = vmatprep.subr.mxu0 0.0
        %502 = vmatpush2.msra.mxu0 0.0
        %503 = vmatprep.subr.mxu0 0.0
        %504 = vmatpush2.msra.mxu0 0.0
        %505 = vmatprep.subr.mxu0 0.0
        %506 = vmatpush2.msra.mxu0 0.0
        %507 = vmatprep.subr.mxu0 0.0
        %508 = vmatpush2.msra.mxu0 0.0
        %509 = vmatprep.subr.mxu0 0.0
        %510 = vmatpush2.msra.mxu0 0.0
        %511 = vmatprep.subr.mxu0 0.0
        %512 = vmatpush2.msra.mxu0 0.0
        %513 = vmatprep.subr.mxu0 0.0
        %514 = vmatpush2.msra.mxu0 0.0
        %515 = vmatprep.subr.mxu0 0.0
        %516 = vmatpush2.msra.mxu0 0.0
        %517 = vmatprep.subr.mxu0 0.0
        %518 = vmatpush2.msra.mxu0 0.0
        %519 = vmatprep.subr.mxu0 0.0
        %520 = vmatpush2.msra.mxu0 0.0
        %521 = vmatprep.subr.mxu0 0.0
        %522 = vmatpush2.msra.mxu0 0.0
        %523 = vmatprep.mubr.f32.mxu0 0.0
        %524 = vmatmul.mubr.f32.gmra.mxu0 %v435
        %v525 = vpop.f32.mrf.mxu0
        %v526 = vadd.f32 0.0, %v525
        %v527 = vpop.f32.mrf.mxu0
        %528 = vmatprep.mubr.f32.mxu0 0.0
        %529 = vmatmul.mubr.f32.gmra.mxu0 %v436
        %v530 = vpop.f32.mrf.mxu0
        %v531 = vadd.f32 0.0, %v530
        %v532 = vpop.f32.mrf.mxu0
        %533 = vmatprep.mubr.f32.mxu0 0.0
        %534 = vmatmul.mubr.f32.gmra.mxu0 %v437
        %v535 = vpop.f32.mrf.mxu0
        %v536 = vadd.f32 0.0, %v535
        %v537 = vpop.f32.mrf.mxu0
        %538 = vmatprep.mubr.f32.mxu0 0.0
        %539 = vmatmul.mubr.f32.gmra.mxu0 %v438
        %v540 = vpop.f32.mrf.mxu0
        %v541 = vadd.f32 0.0, %v540
        %v542 = vpop.f32.mrf.mxu0
        %543 = vmatprep.mubr.f32.mxu0 0.0
        %544 = vmatmul.mubr.f32.gmra.mxu0 %v439
        %v545 = vpop.f32.mrf.mxu0
        %v546 = vadd.f32 0.0, %v545
        %v547 = vpop.f32.mrf.mxu0
        %548 = vmatprep.mubr.f32.mxu0 0.0
        %549 = vmatmul.mubr.f32.gmra.mxu0 %v440
        %v550 = vpop.f32.mrf.mxu0
        %v551 = vadd.f32 0.0, %v550
        %v552 = vpop.f32.mrf.mxu0
        %553 = vmatprep.mubr.f32.mxu0 0.0
        %554 = vmatmul.mubr.f32.gmra.mxu0 %v441
        %v555 = vpop.f32.mrf.mxu0
        %v556 = vadd.f32 0.0, %v555
        %v557 = vpop.f32.mrf.mxu0
        %558 = vmatprep.mubr.f32.mxu0 0.0
        %559 = vmatmul.mubr.f32.gmra.mxu0 %v442
        %v560 = vpop.f32.mrf.mxu0
        %v561 = vadd.f32 0.0, %v560
        %v562 = vpop.f32.mrf.mxu0
        %563 = vdwg.mxu0
        %v564 = vmul.f32 %v385, %v526
        %v565 = vmul.f32 %v386, %v531
        %v566 = vmul.f32 %v387, %v536
        %v567 = vmul.f32 %v388, %v541
        %v568 = vmul.f32 %v389, %v546
        %v569 = vmul.f32 %v390, %v551
        %v570 = vmul.f32 %v391, %v556
        %v571 = vmul.f32 %v392, %v561
        %572 = vst [vmem:[%s234] sm:$0xff] %v564
        %573 = vst [vmem:[%s234 + $0x8] sm:$0xff] %v565
        %574 = vst [vmem:[%s234 + $0x10] sm:$0xff] %v566
        %575 = vst [vmem:[%s234 + $0x18] sm:$0xff] %v567
        %576 = vst [vmem:[%s234 + $0x20] sm:$0xff] %v568
        %577 = vst [vmem:[%s234 + $0x28] sm:$0xff] %v569
        %578 = vst [vmem:[%s234 + $0x30] sm:$0xff] %v570
        %579 = vst [vmem:[%s234 + $0x38] sm:$0xff] %v571
        %s580 = sand.u32 %s142, 1
        %s581 = scalar_lea.sflag [#allocation3], %s580
        %s582 = sand.u32 %s142, 1
        %s583 = smul.addr %s582, 64
        %s584 = scalar_lea.vmem [#allocation2], %s583
        // Predicated region
        $region41: #{tpu_custom_call.1} parent=39 // pred_check
          %p585 = pneg %p152
        $region42: #{tpu_custom_call.1} parent=39 // pred_check_branch
          %587 = sbr.rel (%p585) target = $region44
        $region43: #{tpu_custom_call.1} parent=39 // pred_region
          %s588 = smul.u32 8, %s19
          %s590 = ssub.s32 1024, 1024
          %591 = vsyncadd %s581, %s590
          %s592 = smul.addr %s588, 128
          %s593 = scalar_lea.hbm %s5, %s592
          %s594 = sshll.u32 %s584, 4
          %s595 = int_to_ptr.vmem [resolvable:$true] %s594
          %600 = dma.vmem_to_hbm [thread:$0]  %s595, 1024, %s593, %s581, 128, 128, 8
        $region44: #{tpu_custom_call.1} parent=39 // pred_fallthru
          _
      $region40: #{tpu_custom_call.1} parent=5 // pred_fallthru
        _
      %p601 = scmp.le.s32.totalorder 2, %s14
      // Predicated region
      $region45: #{tpu_custom_call.1} parent=5 // pred_check
        %p602 = pneg %p601
      $region46: #{tpu_custom_call.1} parent=5 // pred_check_branch
        %604 = sbr.rel (%p602) target = $region48
      $region47: #{tpu_custom_call.1} parent=5 // pred_region
        %s605 = ssub.s32 %s14, 2
        // Predicated region
        $region49: #{tpu_custom_call.1} parent=47 // pred_check
          %p606 = pneg %p158
        $region50: #{tpu_custom_call.1} parent=47 // pred_check_branch
          %608 = sbr.rel (%p606) target = $region52
        $region51: #{tpu_custom_call.1} parent=47 // pred_region
          %s609 = sand.u32 %s143, 1
          %s610 = scalar_lea.sflag [#allocation3], %s609
          %s611 = sand.u32 %s143, 1
          %s612 = smul.addr %s611, 64
          %s613 = scalar_lea.vmem [#allocation2], %s612
          %614 = dma.done %s610, 1024
        $region52: #{tpu_custom_call.1} parent=47 // pred_fallthru
          _
      $region48: #{tpu_custom_call.1} parent=5 // pred_fallthru
        _
    $region6: #{tpu_custom_call.1} parent=1 // loop_footer
      %s18 = sadd.s32 1, %s14
    $region7: #{tpu_custom_call.1} parent=1 // loop_footer_branch
      %13 = sbr.rel target = $region3
    $region8: #{tpu_custom_call.1} parent=1 // loop_exit
      _
    %615 = vsyncpa [#allocation3], 1
    %s616 = scalar_lea.sflag [#allocation3], 1
    %617 = vsyncpa %s616, 1

</llo_original>
